<compile_context>
chip_gen: v7x
topology: tpu7x:2x2x1
jax: 0.10.0
libtpu: 0.0.40
codegen_flags: <defaults>
</compile_context>

<pallas_src>
import functools

import jax
import jax.numpy as jnp
from jax.experimental import pallas as pl
from jax.experimental.pallas import tpu as pltpu


def _kmeans_fwd_kernel(x_ref, means_t_ref, msq_ref, dists_ref, sse_ref):
    # x_ref:       (B, 1, bl, D)   all batches for head h, L-tile lt
    # means_t_ref: (1, D, C)       per-head means, pre-transposed (head-resident)
    # msq_ref:     (1, 1, C)       per-head ||means_c||^2 (precomputed, resident)
    # dists_ref:   (B, 1, bl, C)
    # sse_ref:     (1, 1, 1, 1)    per-(h, lt) SSE partial sum
    Bb, _, bl, D = x_ref.shape
    C = means_t_ref.shape[2]
    M = Bb * bl

    x = x_ref[...].reshape(M, D).astype(jnp.float32)              # (M, D)

    # F.normalize(x, 2, -1): x / max(||x||, 1e-12) == x * rsqrt(max(||x||^2, 1e-24))
    sumsq = jnp.sum(x * x, axis=-1, keepdims=True)                 # (M, 1)
    rsq = jax.lax.rsqrt(jnp.maximum(sumsq, 1e-24))
    x_n = x * rsq
    xn_sq = sumsq * (rsq * rsq)                                    # ||x_n||^2 incl. eps clamp

    # dists = x_n @ means^T as a plain (M,D)@(D,C) MXU matmul (means pre-transposed).
    mm_dtype = (jnp.bfloat16
                if jnp.dtype(x_ref.dtype) == jnp.dtype(jnp.bfloat16)
                else jnp.float32)
    means_t = means_t_ref[0].astype(mm_dtype)                      # (D, C)
    dists = jnp.dot(x_n.astype(mm_dtype), means_t,
                    preferred_element_type=jnp.float32)            # (M, C)

    dists_ref[...] = dists.reshape(Bb, 1, bl, C).astype(dists_ref.dtype)

    # First-argmax (torch.max tie-break) over clusters.
    lane_iota = jax.lax.broadcasted_iota(jnp.int32, (M, C), 1)
    max_val = jnp.max(dists, axis=-1, keepdims=True)               # <x_n, means[bucket]>
    bucket = jnp.min(jnp.where(dists == max_val, lane_iota, C),
                     axis=-1, keepdims=True)                       # (M, 1)

    # ||means[bucket]||^2 via VPU select + lane reduce (no one-hot matmul).
    msq = msq_ref[...].reshape(1, C).astype(jnp.float32)           # (1, C)
    msq_sel = jnp.sum(jnp.where(lane_iota == bucket, msq, 0.0),
                      axis=-1, keepdims=True)                      # (M, 1)

    # sum_D (x_n - m_b)^2 = ||x_n||^2 - 2<x_n, m_b> + ||m_b||^2
    per_row = xn_sq - 2.0 * max_val + msq_sel                      # (M, 1)
    sse_ref[...] = jnp.sum(per_row, axis=0, keepdims=True).reshape(1, 1, 1, 1)


def _round_up(v, m):
    return ((v + m - 1) // m) * m


def _vmem_limit_and_budget():
    """Generation-aware scoped-VMEM limit and per-step working-set budget."""
    try:
        cap = int(pltpu.get_tpu_info().vmem_capacity_bytes)
    except Exception:
        cap = 128 * 1024 * 1024
    # ~40 MiB on v7x (64 MiB VMEM/TC), ~80 MiB on v5e/v6e (128 MiB VMEM).
    limit = min(cap * 5 // 8, 80 * 1024 * 1024)
    budget = (limit * 3) // 4                      # headroom for compiler scratch
    return limit, budget


def _pick_block_l(L, B, D, C, itemsize, budget):
    """Largest sublane-aligned divisor of L whose working set fits the budget."""
    d_lane = _round_up(D, 128)                     # minor dims are lane-padded in VMEM
    c_lane = _round_up(C, 128)
    sub = 16 if itemsize == 2 else 8               # sublane pack (bf16 vs f32)

    def working_set(bl):
        m = B * bl
        io = 2 * B * bl * (d_lane + c_lane) * itemsize       # double-buffered x + dists
        interm = m * (2 * d_lane + 3 * c_lane) * 4           # live f32 intermediates
        fixed = 2 * C * d_lane * itemsize + 2 * c_lane * 4   # means dbuf + means_sq
        return io + interm + fixed

    cands = [bl for bl in range(sub, L + 1, sub) if L % bl == 0]
    if not cands:
        cands = [L]                                # L smaller than / not a multiple of sub
    best = cands[0]
    for bl in cands:                               # ascending: keep largest that fits
        if working_set(bl) <= budget:
            best = bl
    return best


@functools.partial(jax.jit, static_argnames=("commitment",))
def kmeans_forward(x, means, commitment=1e-4):
    """Returns (dists, loss) matching Kmeans.forward(x, update_means=False)."""
    B, H, L, D = x.shape
    Hm, C, Dm = means.shape
    assert Hm == H and Dm == D

    means = means.astype(x.dtype)                              # reference: means.type(dtype)
    means_t = jnp.swapaxes(means, 1, 2)                        # (H, D, C)
    means_sq = jnp.sum(jnp.square(means.astype(jnp.float32)),
                       axis=-1)[:, None, :]                    # (H, 1, C)

    itemsize = jnp.dtype(x.dtype).itemsize
    vmem_limit, budget = _vmem_limit_and_budget()
    bl = _pick_block_l(L, B, D, C, itemsize, budget)
    l_tiles = L // bl

    flops = 2 * B * H * L * C * D + 6 * B * H * L * D
    bytes_accessed = (B * H * L * D * itemsize                 # x read
                      + B * H * L * C * itemsize               # dists write
                      + H * C * D * itemsize                   # means read
                      + H * l_tiles * 4)                       # sse partials

    dists, sse = pl.pallas_call(
        _kmeans_fwd_kernel,
        out_shape=(
            jax.ShapeDtypeStruct((B, H, L, C), x.dtype),
            jax.ShapeDtypeStruct((H, l_tiles, 1, 1), jnp.float32),
        ),
        grid_spec=pltpu.PrefetchScalarGridSpec(
            num_scalar_prefetch=0,
            grid=(H, l_tiles),
            in_specs=[
                pl.BlockSpec((B, 1, bl, D), lambda h, lt: (0, h, lt, 0)),
                pl.BlockSpec((1, D, C), lambda h, lt: (h, 0, 0)),   # resident per head
                pl.BlockSpec((1, 1, C), lambda h, lt: (h, 0, 0)),   # resident per head
            ],
            out_specs=(
                pl.BlockSpec((B, 1, bl, C), lambda h, lt: (0, h, lt, 0)),
                pl.BlockSpec((1, 1, 1, 1), lambda h, lt: (h, lt, 0, 0)),
            ),
        ),
        compiler_params=pltpu.CompilerParams(
            dimension_semantics=("parallel", "parallel"),
            vmem_limit_bytes=vmem_limit,
        ),
        cost_estimate=pl.CostEstimate(
            flops=flops,
            transcendentals=B * H * L,
            bytes_accessed=bytes_accessed,
        ),
    )(x, means_t, means_sq)

    # mse_loss reduction='mean' over all B*H*L*D elements, then * commitment.
    loss = (jnp.sum(sse) / (B * H * L * D)) * commitment
    return dists, loss.astype(x.dtype)


if __name__ == "__main__":
    # Small shapes consistent with the module: batch=2, heads=4, seq=8,
    # head_dim=32, num_clusters=8.
    B, H, L, D, C = 2, 4, 8, 32, 8
    key = jax.random.PRNGKey(0)
    kx, km = jax.random.split(key)

    x = jax.random.normal(kx, (B, H, L, D), dtype=jnp.float32)
    # register_buffer('means', torch.randn(num_heads, num_clusters, head_dim))
    means = jax.random.normal(km, (H, C, D), dtype=jnp.float32)

    dists, loss = kmeans_forward(x, means, commitment=1e-4)
    jax.block_until_ready((dists, loss))

    assert dists.shape == (B, H, L, C)
    assert loss.shape == ()

    # Pure-JAX reference check (generous tolerance; MXU vs XLA accumulation order).
    x_n = x / jnp.maximum(jnp.linalg.norm(x, axis=-1, keepdims=True), 1e-12)
    dists_ref = jnp.einsum('bhld,hcd->bhlc', x_n, means)
    buckets = jnp.argmax(dists_ref, axis=-1)
    routed = jnp.take_along_axis(
        jnp.broadcast_to(means[None], (B, H, C, D)), buckets[..., None], axis=2)
    loss_ref = jnp.mean((x_n - routed) ** 2) * 1e-4

    assert bool(jnp.allclose(dists, dists_ref, atol=5e-2, rtol=5e-2))
    assert bool(jnp.allclose(loss, loss_ref, rtol=5e-2, atol=1e-7))
    print("KERNEL_OK")
</pallas_src>

<mosaic_0001>
module attributes {stable_mosaic.version = 11 : i64} {
  func.func @_kmeans_fwd_kernel(%arg0: i32, %arg1: i32, %arg2: memref<2x1x8x32xf32, #tpu.memory_space<vmem>>, %arg3: memref<1x32x8xf32, #tpu.memory_space<vmem>>, %arg4: memref<1x1x8xf32, #tpu.memory_space<vmem>>, %arg5: memref<2x1x8x8xf32, #tpu.memory_space<vmem>>, %arg6: memref<1x1x1x1xf32, #tpu.memory_space<vmem>>) attributes {dimension_semantics = [#tpu.dimension_semantics<parallel>, #tpu.dimension_semantics<parallel>], iteration_bounds = array<i64: 4, 1>, scalar_prefetch = 0 : i64, scratch_operands = 0 : i64, tpu.core_type = #tpu.core_type<tc>, window_params = [{transform_indices = @transform_0, window_bounds = array<i64: 2, 1, 8, 32>}, {transform_indices = @transform_1, window_bounds = array<i64: 1, 32, 8>}, {transform_indices = @transform_2, window_bounds = array<i64: 1, 1, 8>}, {transform_indices = @transform_3, window_bounds = array<i64: 2, 1, 8, 8>}, {transform_indices = @transform_4, window_bounds = array<i64: 1, 1, 1, 1>}]} {
    %c0 = arith.constant 0 : index
    %c0_0 = arith.constant 0 : index
    %c0_1 = arith.constant 0 : index
    %c0_2 = arith.constant 0 : index
    %0 = vector.load %arg2[%c0, %c0_0, %c0_1, %c0_2] : memref<2x1x8x32xf32, #tpu.memory_space<vmem>>, vector<2x1x8x32xf32>
    %1 = vector.shape_cast %0 : vector<2x1x8x32xf32> to vector<16x32xf32>
    %2 = arith.mulf %1, %1 : vector<16x32xf32>
    %cst = arith.constant dense<0.000000e+00> : vector<16xf32>
    %3 = vector.multi_reduction <add>, %2, %cst [1] : vector<16x32xf32> to vector<16xf32>
    %4 = vector.shape_cast %3 : vector<16xf32> to vector<16x1xf32>
    %cst_3 = arith.constant 1.000000e-24 : f32
    %5 = vector.broadcast %cst_3 : f32 to vector<16x1xf32>
    %6 = arith.maximumf %4, %5 : vector<16x1xf32>
    %7 = math.rsqrt %6 : vector<16x1xf32>
    %8 = vector.broadcast %7 : vector<16x1xf32> to vector<16x32xf32>
    %9 = arith.mulf %1, %8 : vector<16x32xf32>
    %10 = arith.mulf %7, %7 : vector<16x1xf32>
    %11 = arith.mulf %4, %10 : vector<16x1xf32>
    %c0_4 = arith.constant 0 : index
    %c0_5 = arith.constant 0 : index
    %c0_6 = arith.constant 0 : index
    %12 = vector.load %arg3[%c0_4, %c0_5, %c0_6] : memref<1x32x8xf32, #tpu.memory_space<vmem>>, vector<1x32x8xf32>
    %13 = vector.shape_cast %12 : vector<1x32x8xf32> to vector<32x8xf32>
    %cst_7 = arith.constant dense<0.000000e+00> : vector<16x8xf32>
    %14 = tpu.matmul %9, %13, %cst_7 {dimension_numbers = #tpu.dot_dimension_numbers<[1], [0], [0], [1], [0, 0, 1, 1], [], []>} : vector<16x32xf32>, vector<32x8xf32>, vector<16x8xf32> -> vector<16x8xf32>
    %15 = vector.shape_cast %14 : vector<16x8xf32> to vector<2x1x8x8xf32>
    %c0_8 = arith.constant 0 : index
    %c0_9 = arith.constant 0 : index
    %c0_10 = arith.constant 0 : index
    %c0_11 = arith.constant 0 : index
    %16 = vector.load %arg5[%c0_8, %c0_9, %c0_10, %c0_11] : memref<2x1x8x8xf32, #tpu.memory_space<vmem>>, vector<2x1x8x8xf32>
    tpu.vector_store %arg5[%c0_8, %c0_9, %c0_10, %c0_11], %15 {strides = array<i32>} : memref<2x1x8x8xf32, #tpu.memory_space<vmem>>, vector<2x1x8x8xf32>,
    %17 = tpu.iota {dimensions = array<i32: 1>} : vector<16x8xi32>
    %cst_12 = arith.constant dense<0xFF800000> : vector<16xf32>
    %18 = vector.multi_reduction <maximumf>, %14, %cst_12 [1] : vector<16x8xf32> to vector<16xf32>
    %19 = vector.shape_cast %18 : vector<16xf32> to vector<16x1xf32>
    %20 = vector.broadcast %19 : vector<16x1xf32> to vector<16x8xf32>
    %21 = arith.cmpf oeq, %14, %20 : vector<16x8xf32>
    %c8_i32 = arith.constant 8 : i32
    %22 = vector.broadcast %c8_i32 : i32 to vector<16x8xi32>
    %23 = arith.select %21, %17, %22 : vector<16x8xi1>, vector<16x8xi32>
    %cst_13 = arith.constant dense<2147483647> : vector<16xi32>
    %24 = vector.multi_reduction <minsi>, %23, %cst_13 [1] : vector<16x8xi32> to vector<16xi32>
    %25 = vector.shape_cast %24 : vector<16xi32> to vector<16x1xi32>
    %c0_14 = arith.constant 0 : index
    %c0_15 = arith.constant 0 : index
    %c0_16 = arith.constant 0 : index
    %26 = vector.load %arg4[%c0_14, %c0_15, %c0_16] : memref<1x1x8xf32, #tpu.memory_space<vmem>>, vector<1x1x8xf32>
    %27 = vector.shape_cast %26 : vector<1x1x8xf32> to vector<1x8xf32>
    %28 = vector.broadcast %25 : vector<16x1xi32> to vector<16x8xi32>
    %29 = arith.cmpi eq, %17, %28 : vector<16x8xi32>
    %cst_17 = arith.constant 0.000000e+00 : f32
    %30 = vector.shape_cast %27 : vector<1x8xf32> to vector<1x8xf32>
    %31 = vector.broadcast %30 : vector<1x8xf32> to vector<16x8xf32>
    %32 = vector.broadcast %cst_17 : f32 to vector<16x8xf32>
    %33 = arith.select %29, %31, %32 : vector<16x8xi1>, vector<16x8xf32>
    %cst_18 = arith.constant dense<0.000000e+00> : vector<16xf32>
    %34 = vector.multi_reduction <add>, %33, %cst_18 [1] : vector<16x8xf32> to vector<16xf32>
    %35 = vector.shape_cast %34 : vector<16xf32> to vector<16x1xf32>
    %cst_19 = arith.constant 2.000000e+00 : f32
    %36 = vector.broadcast %cst_19 : f32 to vector<16x1xf32>
    %37 = arith.mulf %36, %19 : vector<16x1xf32>
    %38 = arith.subf %11, %37 : vector<16x1xf32>
    %39 = arith.addf %38, %35 : vector<16x1xf32>
    %cst_20 = arith.constant dense<0.000000e+00> : vector<1xf32>
    %40 = vector.multi_reduction <add>, %39, %cst_20 [0] : vector<16x1xf32> to vector<1xf32>
    %41 = vector.shape_cast %40 : vector<1xf32> to vector<1x1xf32>
    %42 = vector.shape_cast %41 : vector<1x1xf32> to vector<1x1x1x1xf32>
    %c0_21 = arith.constant 0 : index
    %c0_22 = arith.constant 0 : index
    %c0_23 = arith.constant 0 : index
    %c0_24 = arith.constant 0 : index
    %43 = vector.load %arg6[%c0_21, %c0_22, %c0_23, %c0_24] : memref<1x1x1x1xf32, #tpu.memory_space<vmem>>, vector<1x1x1x1xf32>
    tpu.vector_store %arg6[%c0_21, %c0_22, %c0_23, %c0_24], %42 {strides = array<i32>} : memref<1x1x1x1xf32, #tpu.memory_space<vmem>>, vector<1x1x1x1xf32>,
    return
  }
  func.func @transform_0(%arg0: i32, %arg1: i32) -> (i32, i32, i32, i32) {
    %c0_i32 = arith.constant 0 : i32
    %c0_i32_0 = arith.constant 0 : i32
    %c0_i32_1 = arith.constant 0 : i32
    return %c0_i32, %arg0, %arg1, %c0_i32_0 : i32, i32, i32, i32
  }
  func.func @transform_1(%arg0: i32, %arg1: i32) -> (i32, i32, i32) {
    %c0_i32 = arith.constant 0 : i32
    %c0_i32_0 = arith.constant 0 : i32
    %c0_i32_1 = arith.constant 0 : i32
    return %arg0, %c0_i32, %c0_i32_0 : i32, i32, i32
  }
  func.func @transform_2(%arg0: i32, %arg1: i32) -> (i32, i32, i32) {
    %c0_i32 = arith.constant 0 : i32
    %c0_i32_0 = arith.constant 0 : i32
    %c0_i32_1 = arith.constant 0 : i32
    return %arg0, %c0_i32, %c0_i32_0 : i32, i32, i32
  }
  func.func @transform_3(%arg0: i32, %arg1: i32) -> (i32, i32, i32, i32) {
    %c0_i32 = arith.constant 0 : i32
    %c0_i32_0 = arith.constant 0 : i32
    %c0_i32_1 = arith.constant 0 : i32
    return %c0_i32, %arg0, %arg1, %c0_i32_0 : i32, i32, i32, i32
  }
  func.func @transform_4(%arg0: i32, %arg1: i32) -> (i32, i32, i32, i32) {
    %c0_i32 = arith.constant 0 : i32
    %c0_i32_0 = arith.constant 0 : i32
    %c0_i32_1 = arith.constant 0 : i32
    return %arg0, %arg1, %c0_i32, %c0_i32_0 : i32, i32, i32, i32
  }
}

</mosaic_0001>

<llo_original>
// kernel: kmeans_forward.1
$region0: #{kmeans_forward.1}
  #allocation0 [shape = 'u32[]', space=smem, size = 0x4, offset = 0x4, fixed_abs, tag = 'smem constant byte address 0x4 - core index']
  #allocation1 [shape = 'u32[144,128]{1,0:T(1,128)}', space=vmem, size = 0x12000, scoped, tag = 'internal scratch']
  %s0 = inlined_call_operand.hbm [shape: f32[2,4,8,32], index: 0, kind: input, shape index: {}]
  %s1 = inlined_call_operand.hbm [shape: f32[4,32,8], index: 1, kind: input, shape index: {}]
  %s2 = inlined_call_operand.hbm [shape: f32[4,1,8], index: 2, kind: input, shape index: {}]
  %s3 = inlined_call_operand.hbm [shape: f32[2,4,8,8], index: 3, kind: output, shape index: {0}]
  %s4 = inlined_call_operand.hbm [shape: f32[4,1,1,1], index: 4, kind: output, shape index: {1}]
  %5 = xla_tuple %s3, %s4
  %s6 = sld [smem:[#allocation0]]
  $region65: #{kmeans_forward.1} parent=0
    _
  %s8 = ssub.s32 1, %s6
  %s9 = scalar_select 0, %s8, %s6
  $region1: #{kmeans_forward.1} parent=0
    #allocation2 [shape = 'u8[16384]{0}', space=vmem, size = 0x4000, scoped, tag = 'input window, operand 0']
    #allocation3 [shape = 's32[2]{0}', space=sflag, size = 0x8, scoped, tag = 'scoped memory for kmeans_forward.1']
    #allocation4 [shape = 's32[2]{0}', space=sflag, size = 0x8, scoped, tag = 'scoped memory for kmeans_forward.1']
    #allocation5 [shape = 'u8[32768]{0}', space=vmem, size = 0x8000, scoped, tag = 'input window, operand 1']
    #allocation6 [shape = 's32[2]{0}', space=sflag, size = 0x8, scoped, tag = 'scoped memory for kmeans_forward.1']
    #allocation7 [shape = 'u8[1024]{0}', space=vmem, size = 0x400, scoped, tag = 'input window, operand 2']
    #allocation8 [shape = 'u8[16384]{0}', space=vmem, size = 0x4000, scoped, tag = 'output window, operand 0']
    #allocation9 [shape = 'u8[1024]{0}', space=vmem, size = 0x400, scoped, tag = 'output window, operand 1']
    #allocation10 [shape = 's32[2]{0}', space=sflag, size = 0x8, scoped, tag = 'scoped memory for kmeans_forward.1']
    %10 = vsyncpa [#allocation3], 0
    %s11 = scalar_lea.sflag [#allocation3], 1
    %12 = vsyncpa %s11, 0
    %13 = vsyncpa [#allocation6], 0
    %s14 = scalar_lea.sflag [#allocation6], 1
    %15 = vsyncpa %s14, 0
    %16 = vsyncpa [#allocation4], 0
    %s17 = scalar_lea.sflag [#allocation4], 1
    %18 = vsyncpa %s17, 0
    %19 = vsyncpa [#allocation10], 0
    %s20 = scalar_lea.sflag [#allocation10], 1
    %21 = vsyncpa %s20, 0
    loop: start=0, step=1, limit=6
    $region2: #{kmeans_forward.1} parent=1 // loop_pre_header
      _
    $region3: #{kmeans_forward.1} parent=1 // loop_header
      %s23 = sphi 0, %s27
      %p24 = scmp.ge.s32.totalorder %s23, 6
      %s30 = sphi 0, %s42
      %s31 = sphi 0, %s38
      %s32 = sphi 0, %s30
      %s33 = sphi 0, %s31
      %s34 = sphi 0, %s32
      %s35 = sphi 0, %s33
      %s47 = sphi 0, %s49
      %s50 = sphi 0, %s47
      %s51 = sphi 0, %s50
      %s67 = sphi 0, %s51
      %s73 = sphi 0, %s75
      %s76 = sphi 0, %s73
      %s77 = sphi 0, %s76
      %s93 = sphi 0, %s77
      %s99 = sphi 0, %s101
      %s102 = sphi 0, %s99
      %s103 = sphi 0, %s102
      %s119 = sphi 0, %s103
      %s127 = sphi 0, %s129
      %s130 = sphi 0, %s127
      %s131 = sphi 0, %s130
      %s147 = sphi 0, %s131
      %s155 = sphi 0, %s157
      %s158 = sphi 0, %s155
      %s159 = sphi 0, %s158
      %s175 = sphi 0, %s159
    $region4: #{kmeans_forward.1} parent=1 // loop_header_branch
      %26 = sbr.rel (%p24) target = $region8
    $region5: #{kmeans_forward.1} parent=1 // loop_body
      %s28 = ssub.s32 %s23, 1
      %s29 = ssub.s32 %s23, 2
      %s36 = sadd.s32 1, %s31
      %p37 = scmp.ge.s32.totalorder %s36, 1
      %s38 = scalar_select %p37, 0, %s36
      %s39 = sadd.s32 1, %s30
      %s40 = scalar_select %p37, %s39, %s30
      %p41 = scmp.ge.s32.totalorder %s40, 4
      %s42 = scalar_select %p41, 0, %s40
      %s43 = ssub.s32 %s30, %s42
      %s44 = ssub.s32 %s31, %s38
      %s45 = sor.u32 %s43, %s44
      %p46 = scmp.eq.s32.totalorder %s45, 0
      %s48 = sadd.s32 %s47, 1
      %s49 = scalar_select %p46, %s47, %s48
      %p52 = pneg %p46
      %p53 = scmp.eq.s32.totalorder %s23, 3
      %p54 = por %p52, %p53
      %p55 = scmp.ne.s32.totalorder %s47, %s50
      %p56 = scmp.eq.s32.totalorder %s23, 0
      %p57 = por %p55, %p56
      %p58 = scmp.ne.s32.totalorder %s47, %s50
      %p59 = scmp.eq.s32.totalorder %s28, 3
      %p60 = por %p58, %p59
      %p61 = scmp.ne.s32.totalorder %s50, %s51
      %p62 = scmp.eq.s32.totalorder %s28, 0
      %p63 = por %p61, %p62
      %p64 = scmp.ne.s32.totalorder %s50, %s51
      %p65 = scmp.eq.s32.totalorder %s29, 3
      %p66 = por %p64, %p65
      %p68 = scmp.ne.s32.totalorder %s51, %s67
      %p69 = scmp.eq.s32.totalorder %s29, 0
      %p70 = por %p68, %p69
      %s71 = ssub.s32 %s30, %s42
      %p72 = scmp.eq.s32.totalorder %s71, 0
      %s74 = sadd.s32 %s73, 1
      %s75 = scalar_select %p72, %s73, %s74
      %p78 = pneg %p72
      %p79 = scmp.eq.s32.totalorder %s23, 3
      %p80 = por %p78, %p79
      %p81 = scmp.ne.s32.totalorder %s73, %s76
      %p82 = scmp.eq.s32.totalorder %s23, 0
      %p83 = por %p81, %p82
      %p84 = scmp.ne.s32.totalorder %s73, %s76
      %p85 = scmp.eq.s32.totalorder %s28, 3
      %p86 = por %p84, %p85
      %p87 = scmp.ne.s32.totalorder %s76, %s77
      %p88 = scmp.eq.s32.totalorder %s28, 0
      %p89 = por %p87, %p88
      %p90 = scmp.ne.s32.totalorder %s76, %s77
      %p91 = scmp.eq.s32.totalorder %s29, 3
      %p92 = por %p90, %p91
      %p94 = scmp.ne.s32.totalorder %s77, %s93
      %p95 = scmp.eq.s32.totalorder %s29, 0
      %p96 = por %p94, %p95
      %s97 = ssub.s32 %s30, %s42
      %p98 = scmp.eq.s32.totalorder %s97, 0
      %s100 = sadd.s32 %s99, 1
      %s101 = scalar_select %p98, %s99, %s100
      %p104 = pneg %p98
      %p105 = scmp.eq.s32.totalorder %s23, 3
      %p106 = por %p104, %p105
      %p107 = scmp.ne.s32.totalorder %s99, %s102
      %p108 = scmp.eq.s32.totalorder %s23, 0
      %p109 = por %p107, %p108
      %p110 = scmp.ne.s32.totalorder %s99, %s102
      %p111 = scmp.eq.s32.totalorder %s28, 3
      %p112 = por %p110, %p111
      %p113 = scmp.ne.s32.totalorder %s102, %s103
      %p114 = scmp.eq.s32.totalorder %s28, 0
      %p115 = por %p113, %p114
      %p116 = scmp.ne.s32.totalorder %s102, %s103
      %p117 = scmp.eq.s32.totalorder %s29, 3
      %p118 = por %p116, %p117
      %p120 = scmp.ne.s32.totalorder %s103, %s119
      %p121 = scmp.eq.s32.totalorder %s29, 0
      %p122 = por %p120, %p121
      %s123 = ssub.s32 %s30, %s42
      %s124 = ssub.s32 %s31, %s38
      %s125 = sor.u32 %s123, %s124
      %p126 = scmp.eq.s32.totalorder %s125, 0
      %s128 = sadd.s32 %s127, 1
      %s129 = scalar_select %p126, %s127, %s128
      %p132 = pneg %p126
      %p133 = scmp.eq.s32.totalorder %s23, 3
      %p134 = por %p132, %p133
      %p135 = scmp.ne.s32.totalorder %s127, %s130
      %p136 = scmp.eq.s32.totalorder %s23, 0
      %p137 = por %p135, %p136
      %p138 = scmp.ne.s32.totalorder %s127, %s130
      %p139 = scmp.eq.s32.totalorder %s28, 3
      %p140 = por %p138, %p139
      %p141 = scmp.ne.s32.totalorder %s130, %s131
      %p142 = scmp.eq.s32.totalorder %s28, 0
      %p143 = por %p141, %p142
      %p144 = scmp.ne.s32.totalorder %s130, %s131
      %p145 = scmp.eq.s32.totalorder %s29, 3
      %p146 = por %p144, %p145
      %p148 = scmp.ne.s32.totalorder %s131, %s147
      %p149 = scmp.eq.s32.totalorder %s29, 0
      %p150 = por %p148, %p149
      %s151 = ssub.s32 %s30, %s42
      %s152 = ssub.s32 %s31, %s38
      %s153 = sor.u32 %s151, %s152
      %p154 = scmp.eq.s32.totalorder %s153, 0
      %s156 = sadd.s32 %s155, 1
      %s157 = scalar_select %p154, %s155, %s156
      %p160 = pneg %p154
      %p161 = scmp.eq.s32.totalorder %s23, 3
      %p162 = por %p160, %p161
      %p163 = scmp.ne.s32.totalorder %s155, %s158
      %p164 = scmp.eq.s32.totalorder %s23, 0
      %p165 = por %p163, %p164
      %p166 = scmp.ne.s32.totalorder %s155, %s158
      %p167 = scmp.eq.s32.totalorder %s28, 3
      %p168 = por %p166, %p167
      %p169 = scmp.ne.s32.totalorder %s158, %s159
      %p170 = scmp.eq.s32.totalorder %s28, 0
      %p171 = por %p169, %p170
      %p172 = scmp.ne.s32.totalorder %s158, %s159
      %p173 = scmp.eq.s32.totalorder %s29, 3
      %p174 = por %p172, %p173
      %p176 = scmp.ne.s32.totalorder %s159, %s175
      %p177 = scmp.eq.s32.totalorder %s29, 0
      %p178 = por %p176, %p177
      %p179 = scmp.le.s32.totalorder 1, %s23
      %p180 = scmp.lt.s32.totalorder %s23, 5
      %p181 = pnand %p179, %p180
      %p182 = pneg %p181
      // Predicated region
      $region9: #{kmeans_forward.1} parent=5 // pred_check
        _
      $region10: #{kmeans_forward.1} parent=5 // pred_check_branch
        %184 = sbr.rel (%p181) target = $region12
      $region11: #{kmeans_forward.1} parent=5 // pred_region
        %s185 = ssub.s32 %s23, 1
      $region12: #{kmeans_forward.1} parent=5 // pred_fallthru
        _
      %p186 = scmp.lt.s32.totalorder %s23, 4
      // Predicated region
      $region13: #{kmeans_forward.1} parent=5 // pred_check
        %p187 = pneg %p186
      $region14: #{kmeans_forward.1} parent=5 // pred_check_branch
        %189 = sbr.rel (%p187) target = $region16
      $region15: #{kmeans_forward.1} parent=5 // pred_region
        // Predicated region
        $region17: #{kmeans_forward.1} parent=15 // pred_check
          %p190 = pneg %p57
        $region18: #{kmeans_forward.1} parent=15 // pred_check_branch
          %192 = sbr.rel (%p190) target = $region20
        $region19: #{kmeans_forward.1} parent=15 // pred_region
          %s193 = sand.u32 %s47, 1
          %s194 = scalar_lea.sflag [#allocation3], %s193
          %s195 = sand.u32 %s47, 1
          %s196 = smul.addr %s195, 16
          %s197 = scalar_lea.vmem [#allocation2], %s196
          %s199 = ssub.s32 256, 256
          %200 = vsyncadd %s194, %s199
          %s201 = sadd.s32 %s31, %s30
          %s202 = smul.addr %s201, 128
          %s203 = scalar_lea.hbm %s0, %s202
          %s204 = sshll.u32 %s197, 4
          %s205 = int_to_ptr.vmem [resolvable:$true] %s204
          %210 = dma.hbm_to_vmem [thread:$0]  %s203, 256, %s205, %s194, 512, 128, 8
        $region20: #{kmeans_forward.1} parent=15 // pred_fallthru
          _
        // Predicated region
        $region21: #{kmeans_forward.1} parent=15 // pred_check
          %p211 = pneg %p83
        $region22: #{kmeans_forward.1} parent=15 // pred_check_branch
          %213 = sbr.rel (%p211) target = $region24
        $region23: #{kmeans_forward.1} parent=15 // pred_region
          %s214 = sand.u32 %s23, 1
          %s215 = scalar_lea.sflag [#allocation6], %s214
          %s216 = sand.u32 %s73, 1
          %s217 = smul.addr %s216, 32
          %s218 = scalar_lea.vmem [#allocation5], %s217
          %s220 = ssub.s32 512, 512
          %221 = vsyncadd %s215, %s220
          %s222 = smul.addr %s30, 4
          %s223 = smul.addr %s222, 128
          %s224 = scalar_lea.hbm %s1, %s223
          %s225 = sshll.u32 %s218, 4
          %s226 = int_to_ptr.vmem [resolvable:$true] %s225
          %231 = dma.hbm_to_vmem [thread:$0]  %s224, 512, %s226, %s215, 128, 128, 8
        $region24: #{kmeans_forward.1} parent=15 // pred_fallthru
          _
        // Predicated region
        $region25: #{kmeans_forward.1} parent=15 // pred_check
          %p232 = pneg %p109
        $region26: #{kmeans_forward.1} parent=15 // pred_check_branch
          %234 = sbr.rel (%p232) target = $region28
        $region27: #{kmeans_forward.1} parent=15 // pred_region
          %s235 = sand.u32 %s23, 1
          %s236 = scalar_lea.sflag [#allocation6], %s235
          %s237 = sand.u32 %s99, 1
          %s238 = scalar_lea.vmem [#allocation7], %s237
          %s240 = ssub.s32 16, 16
          %241 = vsyncadd %s236, %s240
          %s242 = smul.addr %s30, 16
          %s243 = scalar_lea.hbm %s2, %s242
          %s245 = sshll.u32 %s238, 4
          %s246 = int_to_ptr.vmem [resolvable:$true] %s245
          %248 = dma.hbm_to_vmem [thread:$0]  %s243, 16, %s246, %s236
        $region28: #{kmeans_forward.1} parent=15 // pred_fallthru
          _
      $region16: #{kmeans_forward.1} parent=5 // pred_fallthru
        _
      %p249 = scmp.le.s32.totalorder 1, %s23
      %p250 = scmp.lt.s32.totalorder %s23, 5
      %p251 = pnand %p249, %p250
      %p252 = pneg %p251
      // Predicated region
      $region29: #{kmeans_forward.1} parent=5 // pred_check
        _
      $region30: #{kmeans_forward.1} parent=5 // pred_check_branch
        %254 = sbr.rel (%p251) target = $region32
      $region31: #{kmeans_forward.1} parent=5 // pred_region
        %s255 = ssub.s32 %s23, 1
        %s256 = sand.u32 %s50, 1
        %s257 = scalar_lea.sflag [#allocation3], %s256
        %s258 = sand.u32 %s50, 1
        %s259 = smul.addr %s258, 16
        %s260 = scalar_lea.vmem [#allocation2], %s259
        // Predicated region
        $region33: #{kmeans_forward.1} parent=31 // pred_check
          %p261 = pneg %p63
        $region34: #{kmeans_forward.1} parent=31 // pred_check_branch
          %263 = sbr.rel (%p261) target = $region36
        $region35: #{kmeans_forward.1} parent=31 // pred_region
          %264 = dma.done %s257, 256
        $region36: #{kmeans_forward.1} parent=31 // pred_fallthru
          _
        %s265 = sand.u32 %s28, 1
        %s266 = scalar_lea.sflag [#allocation6], %s265
        %s267 = sand.u32 %s76, 1
        %s268 = smul.addr %s267, 32
        %s269 = scalar_lea.vmem [#allocation5], %s268
        // Predicated region
        $region37: #{kmeans_forward.1} parent=31 // pred_check
          %p270 = pneg %p89
        $region38: #{kmeans_forward.1} parent=31 // pred_check_branch
          %272 = sbr.rel (%p270) target = $region40
        $region39: #{kmeans_forward.1} parent=31 // pred_region
          %273 = dma.done %s266, 512
        $region40: #{kmeans_forward.1} parent=31 // pred_fallthru
          _
        %s274 = sand.u32 %s28, 1
        %s275 = scalar_lea.sflag [#allocation6], %s274
        %s276 = sand.u32 %s102, 1
        %s277 = scalar_lea.vmem [#allocation7], %s276
        // Predicated region
        $region41: #{kmeans_forward.1} parent=31 // pred_check
          %p278 = pneg %p115
        $region42: #{kmeans_forward.1} parent=31 // pred_check_branch
          %280 = sbr.rel (%p278) target = $region44
        $region43: #{kmeans_forward.1} parent=31 // pred_region
          %281 = dma.done %s275, 16
        $region44: #{kmeans_forward.1} parent=31 // pred_fallthru
          _
        %s282 = sand.u32 %s50, 1
        %s283 = scalar_lea.sflag [#allocation3], %s282
        %s284 = sand.u32 %s50, 1
        %s285 = smul.addr %s284, 16
        %s286 = scalar_lea.vmem [#allocation2], %s285
        %p287 = pneg %p63
        %p288 = pneg %p60
        %s289 = sand.u32 %s28, 1
        %s290 = scalar_lea.sflag [#allocation6], %s289
        %s291 = sand.u32 %s76, 1
        %s292 = smul.addr %s291, 32
        %s293 = scalar_lea.vmem [#allocation5], %s292
        %p294 = pneg %p89
        %p295 = pneg %p86
        %s296 = sand.u32 %s28, 1
        %s297 = scalar_lea.sflag [#allocation6], %s296
        %s298 = sand.u32 %s102, 1
        %s299 = scalar_lea.vmem [#allocation7], %s298
        %p300 = pneg %p115
        %p301 = pneg %p112
        %p302 = pneg %p143
        %p303 = pneg %p140
        %s304 = sand.u32 %s130, 1
        %s305 = scalar_lea.sflag [#allocation4], %s304
        %s306 = sand.u32 %s130, 1
        %s307 = smul.addr %s306, 16
        %s308 = scalar_lea.vmem [#allocation8], %s307
        %p309 = pneg %p171
        %p310 = pneg %p168
        %s311 = sand.u32 %s158, 1
        %s312 = scalar_lea.sflag [#allocation10], %s311
        %s313 = sand.u32 %s158, 1
        %s314 = scalar_lea.vmem [#allocation9], %s313
        %v315 = vld [vmem:[%s260] sm:$0xff]
        %v316 = vld [vmem:[%s260 + $0x8] sm:$0xff]
        %v317 = vmul.f32 %v315, %v315
        %v318 = vmul.f32 %v316, %v316
        %vm319 = vcmask 261120
        %v320 = vsel %vm319, %v317, 0.0
        %321 = vadd.xlane.f32.xlu0 %v320
        %v322 = vpop.xlane.xlu0 %321
        %v323 = vsel %vm319, %v318, 0.0
        %324 = vadd.xlane.f32.xlu0 %v323
        %v325 = vpop.xlane.xlu0 %324
        %v326 = vmax.f32 %v322, 1e-24
        %v327 = vmax.f32 %v325, 1e-24
        %v328 = vrsqrt.pop %v326
        %v329 = vrsqrt.pop %v327
        %v330 = vmul.f32 %v315, %v328
        %v331 = vmul.f32 %v316, %v329
        %v332 = vmul.f32 %v328, %v328
        %v333 = vmul.f32 %v329, %v329
        %v334 = vmul.f32 %v322, %v332
        %v335 = vmul.f32 %v325, %v333
        %v336 = vld [vmem:[%s269] sm:$0xff]
        %v337 = vld [vmem:[%s269 + $0x8] sm:$0xff]
        %v338 = vld [vmem:[%s269 + $0x10] sm:$0xff]
        %v339 = vld [vmem:[%s269 + $0x18] sm:$0xff]
        %v341 = vsel %vm319, %v330, 0
        %v344 = vsel %vm319, %v331, 0
        %346 = vmatprep.subr.mxu0 0.0
        %347 = vmatpush1.msra.mxu0 %v336
        %348 = vmatprep.subr.mxu0 0.0
        %349 = vmatpush1.msra.mxu0 %v337
        %350 = vmatprep.subr.mxu0 0.0
        %351 = vmatpush1.msra.mxu0 %v338
        %352 = vmatprep.subr.mxu0 0.0
        %353 = vmatpush1.msra.mxu0 %v339
        %354 = vmatprep.subr.mxu0 0.0
        %355 = vmatpush1.msra.mxu0 0.0
        %356 = vmatprep.subr.mxu0 0.0
        %357 = vmatpush1.msra.mxu0 0.0
        %358 = vmatprep.subr.mxu0 0.0
        %359 = vmatpush1.msra.mxu0 0.0
        %360 = vmatprep.subr.mxu0 0.0
        %361 = vmatpush1.msra.mxu0 0.0
        %362 = vmatprep.subr.mxu0 0.0
        %363 = vmatpush1.msra.mxu0 0.0
        %364 = vmatprep.subr.mxu0 0.0
        %365 = vmatpush1.msra.mxu0 0.0
        %366 = vmatprep.subr.mxu0 0.0
        %367 = vmatpush1.msra.mxu0 0.0
        %368 = vmatprep.subr.mxu0 0.0
        %369 = vmatpush1.msra.mxu0 0.0
        %370 = vmatprep.subr.mxu0 0.0
        %371 = vmatpush1.msra.mxu0 0.0
        %372 = vmatprep.subr.mxu0 0.0
        %373 = vmatpush1.msra.mxu0 0.0
        %374 = vmatprep.subr.mxu0 0.0
        %375 = vmatpush1.msra.mxu0 0.0
        %376 = vmatprep.subr.mxu0 0.0
        %377 = vmatpush1.msra.mxu0 0.0
        %378 = vmatprep.subr.mxu0 0.0
        %379 = vmatpush1.msra.mxu0 0.0
        %380 = vmatprep.subr.mxu0 0.0
        %381 = vmatpush1.msra.mxu0 0.0
        %382 = vmatprep.subr.mxu0 0.0
        %383 = vmatpush1.msra.mxu0 0.0
        %384 = vmatprep.subr.mxu0 0.0
        %385 = vmatpush1.msra.mxu0 0.0
        %386 = vmatprep.subr.mxu0 0.0
        %387 = vmatpush1.msra.mxu0 0.0
        %388 = vmatprep.subr.mxu0 0.0
        %389 = vmatpush1.msra.mxu0 0.0
        %390 = vmatprep.subr.mxu0 0.0
        %391 = vmatpush1.msra.mxu0 0.0
        %392 = vmatprep.subr.mxu0 0.0
        %393 = vmatpush1.msra.mxu0 0.0
        %394 = vmatprep.subr.mxu0 0.0
        %395 = vmatpush1.msra.mxu0 0.0
        %396 = vmatprep.subr.mxu0 0.0
        %397 = vmatpush1.msra.mxu0 0.0
        %398 = vmatprep.subr.mxu0 0.0
        %399 = vmatpush1.msra.mxu0 0.0
        %400 = vmatprep.subr.mxu0 0.0
        %401 = vmatpush1.msra.mxu0 0.0
        %402 = vmatprep.subr.mxu0 0.0
        %403 = vmatpush1.msra.mxu0 0.0
        %404 = vmatprep.subr.mxu0 0.0
        %405 = vmatpush1.msra.mxu0 0.0
        %406 = vmatprep.subr.mxu0 0.0
        %407 = vmatpush1.msra.mxu0 0.0
        %408 = vmatprep.subr.mxu0 0.0
        %409 = vmatpush1.msra.mxu0 0.0
        %410 = vmatprep.mubr.f32.mxu0 0.0
        %411 = vmatmul.mubr.f32.gmra.mrb[0].mxu0 %v341
        %v412 = vpop.f32.mrb[0].mxu0
        %v413 = vadd.f32 0.0, %v412
        %v414 = vpop.f32.mrb[0].mxu0
        %415 = vmatprep.mubr.f32.mxu0 0.0
        %416 = vmatmul.mubr.f32.gmra.mrb[0].mxu0 %v344
        %v417 = vpop.f32.mrb[0].mxu0
        %v418 = vadd.f32 0.0, %v417
        %v419 = vpop.f32.mrb[0].mxu0
        %420 = vdwg.mxu0
        %vm421 = vcmask 64512
        %422 = vst.msk [vmem:[%s308] sm:$0xff] %vm421, %v413
        %423 = vst.msk [vmem:[%s308 + $0x8] sm:$0xff] %vm421, %v418
        %v424 = vlaneseq
        %v425 = vand.u32 %v424, 127
        %v426 = vsel %vm421, %v413, -inf
        %427 = vmax.xlane.f32.xlu0 %v426
        %v428 = vpop.xlane.xlu0 %427
        %v429 = vsel %vm421, %v418, -inf
        %430 = vmax.xlane.f32.xlu0 %v429
        %v431 = vpop.xlane.xlu0 %430
        %vm432 = vcmp.eq.f32.partialorder %v413, %v428
        %vm433 = vcmp.eq.f32.partialorder %v418, %v431
        %v434 = vsel %vm432, %v425, 8
        %v435 = vsel %vm433, %v425, 8
        %v436 = vsel %vm421, %v434, 2147483647
        %v437 = vand.u32 %v436, 65535
        %v438 = vshra.s32 %v436, 16
        %v439 = vcvt.s32.f32 %v437
        %v440 = vcvt.s32.f32 %v438
        %441 = vmin.xlane.f32.xlu0 %v440
        %v442 = vpop.xlane.xlu0 %441
        %vm443 = vcmp.eq.f32.partialorder %v440, %v442
        %v444 = vsel %vm443, %v439, inf
        %445 = vmin.xlane.f32.xlu0 %v444
        %v446 = vpop.xlane.xlu0 %445
        %v447 = vcvt.f32.s32 %v446
        %v448 = vcvt.f32.s32 %v442
        %v449 = vshll.u32 %v448, 16
        %v450 = vadd.s32 %v449, %v447
        %v451 = vsel %vm421, %v435, 2147483647
        %v452 = vand.u32 %v451, 65535
        %v453 = vshra.s32 %v451, 16
        %v454 = vcvt.s32.f32 %v452
        %v455 = vcvt.s32.f32 %v453
        %456 = vmin.xlane.f32.xlu0 %v455
        %v457 = vpop.xlane.xlu0 %456
        %vm458 = vcmp.eq.f32.partialorder %v455, %v457
        %v459 = vsel %vm458, %v454, inf
        %460 = vmin.xlane.f32.xlu0 %v459
        %v461 = vpop.xlane.xlu0 %460
        %v462 = vcvt.f32.s32 %v461
        %v463 = vcvt.f32.s32 %v457
        %v464 = vshll.u32 %v463, 16
        %v465 = vadd.s32 %v464, %v462
        %v466 = vld [vmem:[%s277] sm:$0x1]
        %vm467 = vcmp.eq.s32.totalorder %v425, %v450
        %vm468 = vcmp.eq.s32.totalorder %v425, %v465
        %v470 = vlaneseq
        %v471 = vshrl.u32 %v470, 7
        %v472 = vsub.s32 0, %v471
        %v473 = vrot.slane %v466, %v472
        %v475 = vsel %vm467, %v473, 0.0
        %v476 = vsel %vm468, %v473, 0.0
        %v477 = vsel %vm421, %v475, 0.0
        %478 = vadd.xlane.f32.xlu0 %v477
        %v479 = vpop.xlane.xlu0 %478
        %v480 = vsel %vm421, %v476, 0.0
        %481 = vadd.xlane.f32.xlu0 %v480
        %v482 = vpop.xlane.xlu0 %481
        %v483 = vmul.f32 %v428, 2.0
        %v484 = vmul.f32 %v431, 2.0
        %v485 = vsub.f32 %v334, %v483
        %v486 = vsub.f32 %v335, %v484
        %v487 = vadd.f32 %v485, %v479
        %v488 = vadd.f32 %v486, %v482
        %v489 = vadd.f32 %v487, %v488
        %v490 = vrot.slane %v489, 4
        %v491 = vadd.f32 %v489, %v490
        %v492 = vrot.slane %v491, 2
        %v493 = vadd.f32 %v491, %v492
        %v494 = vrot.slane %v493, 1
        %v495 = vadd.f32 %v493, %v494
        %vm496 = vcmask 0
        %497 = vst.msk [vmem:[%s314] sm:$0x1] %vm496, %v495
        %s498 = sand.u32 %s130, 1
        %s499 = scalar_lea.sflag [#allocation4], %s498
        %s500 = sand.u32 %s130, 1
        %s501 = smul.addr %s500, 16
        %s502 = scalar_lea.vmem [#allocation8], %s501
        %s503 = sand.u32 %s158, 1
        %s504 = scalar_lea.sflag [#allocation10], %s503
        %s505 = sand.u32 %s158, 1
        %s506 = scalar_lea.vmem [#allocation9], %s505
        // Predicated region
        $region45: #{kmeans_forward.1} parent=31 // pred_check
          %p507 = pneg %p140
        $region46: #{kmeans_forward.1} parent=31 // pred_check_branch
          %509 = sbr.rel (%p507) target = $region48
        $region47: #{kmeans_forward.1} parent=31 // pred_region
          %s511 = ssub.s32 256, 256
          %512 = vsyncadd %s499, %s511
          %s513 = sadd.s32 %s33, %s32
          %s514 = smul.addr %s513, 128
          %s515 = scalar_lea.hbm %s3, %s514
          %s516 = sshll.u32 %s502, 4
          %s517 = int_to_ptr.vmem [resolvable:$true] %s516
          %522 = dma.vmem_to_hbm [thread:$0]  %s517, 256, %s515, %s499, 128, 512, 8
        $region48: #{kmeans_forward.1} parent=31 // pred_fallthru
          _
        // Predicated region
        $region49: #{kmeans_forward.1} parent=31 // pred_check
          %p523 = pneg %p168
        $region50: #{kmeans_forward.1} parent=31 // pred_check_branch
          %525 = sbr.rel (%p523) target = $region52
        $region51: #{kmeans_forward.1} parent=31 // pred_region
          %s527 = ssub.s32 16, 16
          %528 = vsyncadd %s504, %s527
          %s529 = sadd.s32 %s33, %s32
          %s530 = smul.addr %s529, 16
          %s531 = scalar_lea.hbm %s4, %s530
          %s533 = sshll.u32 %s506, 4
          %s534 = int_to_ptr.vmem [resolvable:$true] %s533
          %536 = dma.vmem_to_hbm [thread:$0]  %s534, 16, %s531, %s504
        $region52: #{kmeans_forward.1} parent=31 // pred_fallthru
          _
      $region32: #{kmeans_forward.1} parent=5 // pred_fallthru
        _
      %p537 = scmp.le.s32.totalorder 2, %s23
      // Predicated region
      $region53: #{kmeans_forward.1} parent=5 // pred_check
        %p538 = pneg %p537
      $region54: #{kmeans_forward.1} parent=5 // pred_check_branch
        %540 = sbr.rel (%p538) target = $region56
      $region55: #{kmeans_forward.1} parent=5 // pred_region
        %s541 = ssub.s32 %s23, 2
        // Predicated region
        $region57: #{kmeans_forward.1} parent=55 // pred_check
          %p542 = pneg %p146
        $region58: #{kmeans_forward.1} parent=55 // pred_check_branch
          %544 = sbr.rel (%p542) target = $region60
        $region59: #{kmeans_forward.1} parent=55 // pred_region
          %s545 = sand.u32 %s131, 1
          %s546 = scalar_lea.sflag [#allocation4], %s545
          %s547 = sand.u32 %s131, 1
          %s548 = smul.addr %s547, 16
          %s549 = scalar_lea.vmem [#allocation8], %s548
          %550 = dma.done %s546, 256
        $region60: #{kmeans_forward.1} parent=55 // pred_fallthru
          _
        // Predicated region
        $region61: #{kmeans_forward.1} parent=55 // pred_check
          %p551 = pneg %p174
        $region62: #{kmeans_forward.1} parent=55 // pred_check_branch
          %553 = sbr.rel (%p551) target = $region64
        $region63: #{kmeans_forward.1} parent=55 // pred_region
          %s554 = sand.u32 %s159, 1
          %s555 = scalar_lea.sflag [#allocation10], %s554
          %s556 = sand.u32 %s159, 1
          %s557 = scalar_lea.vmem [#allocation9], %s556
          %558 = dma.done %s555, 16
        $region64: #{kmeans_forward.1} parent=55 // pred_fallthru
          _
      $region56: #{kmeans_forward.1} parent=5 // pred_fallthru
        _
    $region6: #{kmeans_forward.1} parent=1 // loop_footer
      %s27 = sadd.s32 1, %s23
    $region7: #{kmeans_forward.1} parent=1 // loop_footer_branch
      %22 = sbr.rel target = $region3
    $region8: #{kmeans_forward.1} parent=1 // loop_exit
      _
    %559 = vsyncpa [#allocation3], 1
    %s560 = scalar_lea.sflag [#allocation3], 1
    %561 = vsyncpa %s560, 1
    %562 = vsyncpa [#allocation6], 1
    %s563 = scalar_lea.sflag [#allocation6], 1
    %564 = vsyncpa %s563, 1
    %565 = vsyncpa [#allocation4], 1
    %s566 = scalar_lea.sflag [#allocation4], 1
    %567 = vsyncpa %s566, 1
    %568 = vsyncpa [#allocation10], 1
    %s569 = scalar_lea.sflag [#allocation10], 1
    %570 = vsyncpa %s569, 1

</llo_original>
